<compile_context>
chip_gen: v7x
topology: tpu7x:2x2x1
jax: 0.10.0
libtpu: 0.0.40
codegen_flags: <defaults>
</compile_context>

<pallas_src>
import functools
from typing import NamedTuple

import jax
import jax.numpy as jnp
from jax.experimental import pallas as pl
from jax.experimental.pallas import tpu as pltpu

EPS = 1e-5            # nn.BatchNorm1d default eps
NEG_SLOPE = 0.01      # nn.LeakyReLU default negative_slope
LANE = 128


# --------------------------------------------------------------------------------------
# Parameter preparation (do transpose / pad / cast once, outside hot loops)
# --------------------------------------------------------------------------------------
class PreparedParams(NamedTuple):
    wt: jax.Array      # (in_dim, out_dim_p), matmul dtype, out_dim padded to a multiple of 128
    gamma: jax.Array   # (1, out_dim_p) float32
    beta: jax.Array    # (1, out_dim_p) float32
    out_dim: int       # un-padded out_dim


def prepare_params(weight, gamma, beta, *, weight_is_transposed=False, use_bf16_matmul=True):
    """Transpose, pad (out_dim only) and cast the layer parameters once."""
    wt = weight if weight_is_transposed else weight.T            # (in_dim, out_dim)
    in_dim, out_dim = wt.shape
    out_pad = (-out_dim) % LANE
    if out_pad:
        wt = jnp.pad(wt, ((0, 0), (0, out_pad)))                 # padded cols -> y == 0, sliced off
    if use_bf16_matmul:
        wt = wt.astype(jnp.bfloat16)
    g = jnp.pad(jnp.asarray(gamma, jnp.float32).reshape(1, out_dim), ((0, 0), (0, out_pad)))
    b = jnp.pad(jnp.asarray(beta, jnp.float32).reshape(1, out_dim), ((0, 0), (0, out_pad)))
    return PreparedParams(wt, g, b, out_dim)


def _vmem_ceiling_bytes():
    """Physical VMEM minus headroom for compiler scratch/spill (generation-aware)."""
    try:
        cap = int(pltpu.get_tpu_info().vmem_capacity_bytes)
    except Exception:
        cap = 64 * 1024 * 1024   # conservative fallback: v7x per-TensorCore VMEM
    return cap - 16 * 1024 * 1024


# --------------------------------------------------------------------------------------
# Kernel 1: resident-activation path (small/medium N) -- one fused kernel per column tile
# --------------------------------------------------------------------------------------
def _resident_kernel(x_ref, wt_ref, gamma_ref, beta_ref, o_ref, *, inv_n):
    # x_ref:  (N, in_dim)  resident across all column tiles (no per-tile casts: done in wrapper)
    # wt_ref: (in_dim, TN) column tile of W^T
    # Linear (no bias) on the MXU, f32 accumulation.
    y = jnp.dot(x_ref[...], wt_ref[...], preferred_element_type=jnp.float32)

    # BatchNorm1d training-mode stats, one pass: var = E[y^2] - mean^2 (biased variance).
    mean = jnp.sum(y, axis=0, keepdims=True) * inv_n              # (1, TN)
    ex2 = jnp.sum(y * y, axis=0, keepdims=True) * inv_n           # (1, TN)
    inv_std = jax.lax.rsqrt(ex2 - mean * mean + EPS)

    # Fold BN affine into a single FMA per element.
    scale = gamma_ref[...] * inv_std
    shift = beta_ref[...] - mean * scale
    z = y * scale + shift
    o_ref[...] = jnp.maximum(z, NEG_SLOPE * z).astype(o_ref.dtype)


def _x_resident_spec(n, in_dim):
    # x is invariant across the column-tile grid -> single-buffer it to halve the dominant
    # VMEM consumer.  Fall back to the default (double-buffered) spec on older jax.
    try:
        return pl.BlockSpec((n, in_dim), lambda j: (0, 0), pipeline_mode=pl.Buffered(1))
    except (TypeError, AttributeError):
        return pl.BlockSpec((n, in_dim), lambda j: (0, 0))


def _forward_resident(x_mm, wt_p, gamma_p, beta_p, n, in_dim, out_dim_p, tn, grid_j,
                      out_dtype, vmem_limit):
    kernel = functools.partial(_resident_kernel, inv_n=1.0 / n)
    return pl.pallas_call(
        kernel,
        out_shape=jax.ShapeDtypeStruct((n, out_dim_p), out_dtype),
        grid_spec=pltpu.PrefetchScalarGridSpec(
            num_scalar_prefetch=0,
            grid=(grid_j,),
            in_specs=[
                _x_resident_spec(n, in_dim),                     # x (resident, single-buffered)
                pl.BlockSpec((in_dim, tn), lambda j: (0, j)),    # W^T column tile (streamed)
                pl.BlockSpec((1, tn), lambda j: (0, j)),         # gamma tile
                pl.BlockSpec((1, tn), lambda j: (0, j)),         # beta tile
            ],
            out_specs=pl.BlockSpec((n, tn), lambda j: (0, j)),   # lane-dense stores
        ),
        compiler_params=pltpu.CompilerParams(
            dimension_semantics=("parallel",),                   # shard column tiles across TCs
            vmem_limit_bytes=vmem_limit,
        ),
    )(x_mm, wt_p, gamma_p, beta_p)


# --------------------------------------------------------------------------------------
# Kernels 2+3: row-tiled fallback for large N (activation does not fit VMEM)
# --------------------------------------------------------------------------------------
def _matmul_stats_kernel(x_ref, wt_ref, gamma_ref, beta_ref, y_ref, stats_ref,
                         sum_sc, sq_sc, *, inv_n):
    mi = pl.program_id(1)

    @pl.when(mi == 0)
    def _():
        sum_sc[...] = jnp.zeros_like(sum_sc)
        sq_sc[...] = jnp.zeros_like(sq_sc)

    y = jnp.dot(x_ref[...], wt_ref[...], preferred_element_type=jnp.float32)
    y_ref[...] = y                                               # f32 intermediate to HBM
    sum_sc[...] += jnp.sum(y, axis=0, keepdims=True)
    sq_sc[...] += jnp.sum(y * y, axis=0, keepdims=True)

    @pl.when(mi == pl.num_programs(1) - 1)
    def _():
        mean = sum_sc[...] * inv_n
        ex2 = sq_sc[...] * inv_n
        inv_std = jax.lax.rsqrt(ex2 - mean * mean + EPS)
        scale = gamma_ref[...] * inv_std
        shift = beta_ref[...] - mean * scale
        stats_ref[...] = jnp.concatenate([scale, shift], axis=0)  # (2, TN)


def _bn_lrelu_kernel(y_ref, stats_ref, o_ref):
    scale = stats_ref[0:1, :]
    shift = stats_ref[1:2, :]
    z = y_ref[...] * scale + shift
    o_ref[...] = jnp.maximum(z, NEG_SLOPE * z).astype(o_ref.dtype)


def _forward_tiled(x_mm, wt_p, gamma_p, beta_p, n, in_dim, out_dim_p, tn, grid_j,
                   tm, out_dtype, vmem_limit):
    assert tm % 8 == 0, "row tile must be a multiple of 8"
    n_pad = ((n + tm - 1) // tm) * tm
    if n_pad != n:
        # Zero rows contribute nothing to sum/sumsq; stats divide by the true n below.
        # TODO(synk): mask the ragged last row-tile in-kernel instead of padding x in HBM.
        x_mm = jnp.pad(x_mm, ((0, n_pad - n), (0, 0)))
    grid_m = n_pad // tm

    stats_kernel = functools.partial(_matmul_stats_kernel, inv_n=1.0 / n)
    y, stats = pl.pallas_call(
        stats_kernel,
        out_shape=(jax.ShapeDtypeStruct((n_pad, out_dim_p), jnp.float32),
                   jax.ShapeDtypeStruct((2, out_dim_p), jnp.float32)),
        grid_spec=pltpu.PrefetchScalarGridSpec(
            num_scalar_prefetch=0,
            grid=(grid_j, grid_m),                               # row-reduction axis last
            in_specs=[
                pl.BlockSpec((tm, in_dim), lambda j, mi: (mi, 0)),
                pl.BlockSpec((in_dim, tn), lambda j, mi: (0, j)),
                pl.BlockSpec((1, tn), lambda j, mi: (0, j)),
                pl.BlockSpec((1, tn), lambda j, mi: (0, j)),
            ],
            out_specs=(pl.BlockSpec((tm, tn), lambda j, mi: (mi, j)),
                       pl.BlockSpec((2, tn), lambda j, mi: (0, j))),   # resident accumulator out
            scratch_shapes=[pltpu.VMEM((1, tn), jnp.float32),
                            pltpu.VMEM((1, tn), jnp.float32)],
        ),
        compiler_params=pltpu.CompilerParams(
            dimension_semantics=("parallel", "arbitrary"),
            vmem_limit_bytes=vmem_limit,
        ),
    )(x_mm, wt_p, gamma_p, beta_p)

    out = pl.pallas_call(
        _bn_lrelu_kernel,
        out_shape=jax.ShapeDtypeStruct((n_pad, out_dim_p), out_dtype),
        grid_spec=pltpu.PrefetchScalarGridSpec(
            num_scalar_prefetch=0,
            grid=(grid_m, grid_j),
            in_specs=[
                pl.BlockSpec((tm, tn), lambda mi, j: (mi, j)),
                pl.BlockSpec((2, tn), lambda mi, j: (0, j)),
            ],
            out_specs=pl.BlockSpec((tm, tn), lambda mi, j: (mi, j)),
        ),
        compiler_params=pltpu.CompilerParams(
            dimension_semantics=("parallel", "parallel"),
            vmem_limit_bytes=vmem_limit,
        ),
    )(y, stats)
    return out[:n]


# --------------------------------------------------------------------------------------
# Public wrapper
# --------------------------------------------------------------------------------------
def linear_layer_forward(x, weight, gamma=None, beta=None, *,
                         weight_is_transposed=False,
                         use_bf16_matmul=True,
                         force_tiled=False,
                         tm=256, tn=None):
    """Pallas equivalent of LinearLayer.forward (training-mode BatchNorm, forward only).

    x:      (N, in_dim) or (B, S, in_dim)
    weight: (out_dim, in_dim) nn.Linear weight, (in_dim, out_dim) if weight_is_transposed,
            or a PreparedParams from prepare_params() (gamma/beta then ignored).
    gamma:  (out_dim,) BatchNorm weight
    beta:   (out_dim,) BatchNorm bias
    """
    if isinstance(weight, PreparedParams):
        params = weight
    else:
        params = prepare_params(weight, gamma, beta,
                                weight_is_transposed=weight_is_transposed,
                                use_bf16_matmul=use_bf16_matmul)
    wt_p, gamma_p, beta_p, out_dim = params

    orig_shape = x.shape
    x2 = x.reshape(-1, x.shape[-1]) if x.ndim == 3 else x
    n, in_dim = x2.shape
    assert in_dim == wt_p.shape[0], "in_dim mismatch between x and weight"
    out_dtype = x.dtype

    # Cast once in the wrapper (never per-tile in the kernel).
    mm_dtype = wt_p.dtype
    x_mm = x2 if x2.dtype == mm_dtype else x2.astype(mm_dtype)

    out_dim_p = wt_p.shape[1]
    # Column tile: prefer 256 (MXU N width on v6e/v7x) only when >= 2 tiles remain,
    # so both v7x TensorCores receive work.
    if tn is None:
        tn = 256 if (out_dim_p % 256 == 0 and out_dim_p >= 512) else LANE
    assert out_dim_p % tn == 0
    grid_j = out_dim_p // tn

    ceiling = _vmem_ceiling_bytes()
    mm_bytes = jnp.dtype(mm_dtype).itemsize
    out_bytes = jnp.dtype(out_dtype).itemsize
    resident_need = (n * in_dim * mm_bytes            # x, single-buffered
                     + 2 * in_dim * tn * mm_bytes     # W^T tile, double-buffered
                     + 2 * n * tn * out_bytes         # output tile, double-buffered
                     + 2 * n * tn * 4                 # f32 y + elementwise temporaries
                     + 4 * tn * 4)                    # gamma/beta tiles

    if (not force_tiled) and resident_need <= int(ceiling * 0.85):
        out = _forward_resident(x_mm, wt_p, gamma_p, beta_p, n, in_dim, out_dim_p, tn, grid_j,
                                out_dtype, ceiling)
    else:
        out = _forward_tiled(x_mm, wt_p, gamma_p, beta_p, n, in_dim, out_dim_p, tn, grid_j,
                             tm, out_dtype, ceiling)

    out = out[:, :out_dim]
    if len(orig_shape) == 3:
        out = out.reshape(orig_shape[0], orig_shape[1], out_dim)
    return out


# --------------------------------------------------------------------------------------
# Pure-JAX reference (matches PyTorch forward in training mode)
# --------------------------------------------------------------------------------------
def _reference(x, weight, gamma, beta):
    orig = x.shape
    x2 = x.reshape(-1, x.shape[-1]) if x.ndim == 3 else x
    y = x2 @ weight.T
    mean = y.mean(axis=0, keepdims=True)
    var = ((y - mean) ** 2).mean(axis=0, keepdims=True)
    z = (y - mean) / jnp.sqrt(var + EPS) * gamma + beta
    out = jnp.where(z > 0, z, NEG_SLOPE * z)
    if x.ndim == 3:
        out = out.reshape(orig[0], orig[1], -1)
    return out


if __name__ == "__main__":
    B, S, IN_DIM, OUT_DIM = 2, 8, 32, 64

    key = jax.random.PRNGKey(0)
    kx, kw, kg, kb, kx2 = jax.random.split(key, 5)

    bound = 1.0 / (IN_DIM ** 0.5)
    weight = jax.random.uniform(kw, (OUT_DIM, IN_DIM), jnp.float32, -bound, bound)
    # Non-trivial BN affine to actually exercise the folded scale/shift math.
    gamma = 1.0 + 0.1 * jax.random.normal(kg, (OUT_DIM,), jnp.float32)
    beta = 0.1 * jax.random.normal(kb, (OUT_DIM,), jnp.float32)

    x3 = jax.random.normal(kx, (B, S, IN_DIM), jnp.float32)
    x2 = jax.random.normal(kx2, (B * S, IN_DIM), jnp.float32)

    # 1) 3D input, default bf16 matmul, resident path.
    out3 = jax.block_until_ready(linear_layer_forward(x3, weight, gamma, beta))
    ref3 = _reference(x3, weight, gamma, beta)
    assert out3.shape == (B, S, OUT_DIM)
    assert jnp.allclose(out3, ref3, atol=3e-2, rtol=3e-2)

    # 2) 2D input, f32 matmul path (tight tolerance), via pre-prepared params.
    params_f32 = prepare_params(weight, gamma, beta, use_bf16_matmul=False)
    out2 = jax.block_until_ready(linear_layer_forward(x2, params_f32))
    ref2 = _reference(x2, weight, gamma, beta)
    assert out2.shape == (B * S, OUT_DIM)
    assert jnp.allclose(out2, ref2, atol=1e-4, rtol=1e-4)

    # 3) Forced row-tiled fallback (large-N path), f32, small row tile to get >1 row tile.
    out2t = jax.block_until_ready(
        linear_layer_forward(x2, weight, gamma, beta,
                             use_bf16_matmul=False, force_tiled=True, tm=8))
    assert out2t.shape == (B * S, OUT_DIM)
    assert jnp.allclose(out2t, ref2, atol=1e-4, rtol=1e-4)

    print("KERNEL_OK")
</pallas_src>

<mosaic_0001>
module attributes {stable_mosaic.version = 11 : i64} {
  func.func @_resident_kernel(%arg0: i32, %arg1: memref<16x32xbf16, #tpu.memory_space<vmem>>, %arg2: memref<32x128xbf16, #tpu.memory_space<vmem>>, %arg3: memref<1x128xf32, #tpu.memory_space<vmem>>, %arg4: memref<1x128xf32, #tpu.memory_space<vmem>>, %arg5: memref<16x128xf32, #tpu.memory_space<vmem>>) attributes {dimension_semantics = [#tpu.dimension_semantics<parallel>], iteration_bounds = array<i64: 1>, scalar_prefetch = 0 : i64, scratch_operands = 0 : i64, tpu.core_type = #tpu.core_type<tc>, window_params = [{pipeline_mode = #tpu.pipeline_mode<synchronous>, transform_indices = @transform_0, window_bounds = array<i64: 16, 32>}, {transform_indices = @transform_1, window_bounds = array<i64: 32, 128>}, {transform_indices = @transform_2, window_bounds = array<i64: 1, 128>}, {transform_indices = @transform_3, window_bounds = array<i64: 1, 128>}, {transform_indices = @transform_4, window_bounds = array<i64: 16, 128>}]} {
    %c0 = arith.constant 0 : index
    %c0_0 = arith.constant 0 : index
    %0 = vector.load %arg1[%c0, %c0_0] : memref<16x32xbf16, #tpu.memory_space<vmem>>, vector<16x32xbf16>
    %c0_1 = arith.constant 0 : index
    %c0_2 = arith.constant 0 : index
    %1 = vector.load %arg2[%c0_1, %c0_2] : memref<32x128xbf16, #tpu.memory_space<vmem>>, vector<32x128xbf16>
    %cst = arith.constant dense<0.000000e+00> : vector<16x128xf32>
    %2 = tpu.matmul %0, %1, %cst {dimension_numbers = #tpu.dot_dimension_numbers<[1], [0], [0], [1], [0, 0, 1, 1], [], []>} : vector<16x32xbf16>, vector<32x128xbf16>, vector<16x128xf32> -> vector<16x128xf32>
    %cst_3 = arith.constant dense<0.000000e+00> : vector<128xf32>
    %3 = vector.multi_reduction <add>, %2, %cst_3 [0] : vector<16x128xf32> to vector<128xf32>
    %4 = vector.shape_cast %3 : vector<128xf32> to vector<1x128xf32>
    %cst_4 = arith.constant 6.250000e-02 : f32
    %5 = vector.broadcast %cst_4 : f32 to vector<1x128xf32>
    %6 = arith.mulf %4, %5 : vector<1x128xf32>
    %7 = arith.mulf %2, %2 : vector<16x128xf32>
    %cst_5 = arith.constant dense<0.000000e+00> : vector<128xf32>
    %8 = vector.multi_reduction <add>, %7, %cst_5 [0] : vector<16x128xf32> to vector<128xf32>
    %9 = vector.shape_cast %8 : vector<128xf32> to vector<1x128xf32>
    %cst_6 = arith.constant 6.250000e-02 : f32
    %10 = vector.broadcast %cst_6 : f32 to vector<1x128xf32>
    %11 = arith.mulf %9, %10 : vector<1x128xf32>
    %12 = arith.mulf %6, %6 : vector<1x128xf32>
    %13 = arith.subf %11, %12 : vector<1x128xf32>
    %cst_7 = arith.constant 9.99999974E-6 : f32
    %14 = vector.broadcast %cst_7 : f32 to vector<1x128xf32>
    %15 = arith.addf %13, %14 : vector<1x128xf32>
    %16 = math.rsqrt %15 : vector<1x128xf32>
    %c0_8 = arith.constant 0 : index
    %c0_9 = arith.constant 0 : index
    %17 = vector.load %arg3[%c0_8, %c0_9] : memref<1x128xf32, #tpu.memory_space<vmem>>, vector<1x128xf32>
    %18 = arith.mulf %17, %16 : vector<1x128xf32>
    %c0_10 = arith.constant 0 : index
    %c0_11 = arith.constant 0 : index
    %19 = vector.load %arg4[%c0_10, %c0_11] : memref<1x128xf32, #tpu.memory_space<vmem>>, vector<1x128xf32>
    %20 = arith.mulf %6, %18 : vector<1x128xf32>
    %21 = arith.subf %19, %20 : vector<1x128xf32>
    %22 = vector.broadcast %18 : vector<1x128xf32> to vector<16x128xf32>
    %23 = arith.mulf %2, %22 : vector<16x128xf32>
    %24 = vector.broadcast %21 : vector<1x128xf32> to vector<16x128xf32>
    %25 = arith.addf %23, %24 : vector<16x128xf32>
    %cst_12 = arith.constant 0.00999999977 : f32
    %26 = vector.broadcast %cst_12 : f32 to vector<16x128xf32>
    %27 = arith.mulf %26, %25 : vector<16x128xf32>
    %28 = arith.maximumf %25, %27 : vector<16x128xf32>
    %c0_13 = arith.constant 0 : index
    %c0_14 = arith.constant 0 : index
    %29 = vector.load %arg5[%c0_13, %c0_14] : memref<16x128xf32, #tpu.memory_space<vmem>>, vector<16x128xf32>
    tpu.vector_store %arg5[%c0_13, %c0_14], %28 {strides = array<i32>} : memref<16x128xf32, #tpu.memory_space<vmem>>, vector<16x128xf32>,
    return
  }
  func.func @transform_0(%arg0: i32) -> (i32, i32) {
    %c0_i32 = arith.constant 0 : i32
    %c0_i32_0 = arith.constant 0 : i32
    %c0_i32_1 = arith.constant 0 : i32
    return %c0_i32, %c0_i32_0 : i32, i32
  }
  func.func @transform_1(%arg0: i32) -> (i32, i32) {
    %c0_i32 = arith.constant 0 : i32
    %c0_i32_0 = arith.constant 0 : i32
    return %c0_i32, %arg0 : i32, i32
  }
  func.func @transform_2(%arg0: i32) -> (i32, i32) {
    %c0_i32 = arith.constant 0 : i32
    %c0_i32_0 = arith.constant 0 : i32
    return %c0_i32, %arg0 : i32, i32
  }
  func.func @transform_3(%arg0: i32) -> (i32, i32) {
    %c0_i32 = arith.constant 0 : i32
    %c0_i32_0 = arith.constant 0 : i32
    return %c0_i32, %arg0 : i32, i32
  }
  func.func @transform_4(%arg0: i32) -> (i32, i32) {
    %c0_i32 = arith.constant 0 : i32
    %c0_i32_0 = arith.constant 0 : i32
    return %c0_i32, %arg0 : i32, i32
  }
}

</mosaic_0001>

<llo_original>
// kernel: tpu_custom_call.1
$region0: #{tpu_custom_call.1}
  #allocation0 [shape = 'u32[]', space=smem, size = 0x4, offset = 0x4, fixed_abs, tag = 'smem constant byte address 0x4 - core index']
  #allocation1 [shape = 'u32[144,128]{1,0:T(1,128)}', space=vmem, size = 0x12000, scoped, tag = 'internal scratch']
  %s0 = inlined_call_operand.hbm [shape: bf16[16,32], index: 0, kind: input, shape index: {}]
  %s1 = inlined_call_operand.hbm [shape: bf16[32,128], index: 1, kind: input, shape index: {}]
  %s2 = inlined_call_operand.vmem [shape: f32[1,128], index: 2, kind: input, shape index: {}]
  %s3 = inlined_call_operand.vmem [shape: f32[1,128], index: 3, kind: input, shape index: {}]
  %s4 = inlined_call_operand.hbm [shape: f32[16,128], index: 4, kind: output, shape index: {}]
  %s5 = sld [smem:[#allocation0]]
  $region34: #{tpu_custom_call.1} parent=0
    _
  %s7 = ssub.s32 1, %s5
  %s8 = scalar_select 0, %s7, %s5
  $region1: #{tpu_custom_call.1} parent=0
    #allocation2 [shape = 'u8[4096]{0}', space=vmem, size = 0x1000, scoped, tag = 'input window, operand 0, single buffered']
    #allocation3 [shape = 's32[1]{0}', space=sflag, size = 0x4, scoped, tag = 'scoped memory for tpu_custom_call.1']
    #allocation4 [shape = 's32[1]{0}', space=sflag, size = 0x4, scoped, tag = 'scoped memory for tpu_custom_call.1']
    #allocation5 [shape = 'u8[8192]{0}', space=vmem, size = 0x2000, scoped, tag = 'input window, operand 1, single buffered']
    #allocation6 [shape = 's32[1]{0}', space=sflag, size = 0x4, scoped, tag = 'scoped memory for tpu_custom_call.1']
    #allocation7 [shape = 'u8[8192]{0}', space=vmem, size = 0x2000, scoped, tag = 'output window, operand 0, single buffered']
    %9 = vsyncpa [#allocation3], 0
    %10 = vsyncpa [#allocation6], 0
    %11 = vsyncpa [#allocation4], 0
    // Predicated region
    $region2: #{tpu_custom_call.1} parent=1 // pred_check
      _
    $region3: #{tpu_custom_call.1} parent=1 // pred_check_branch
      %13 = sbr.rel (0) target = $region5
    $region4: #{tpu_custom_call.1} parent=1 // pred_region
      %s15 = ssub.s32 128, 128
      %16 = vsyncadd [#allocation3], %s15
      %s17 = sshll.u32 [#allocation2], 4
      %s18 = int_to_ptr.vmem [resolvable:$true] %s17
      %23 = dma.hbm_to_vmem [thread:$0]  %s0, 128, %s18, [#allocation3], 64, 64, 4
    $region5: #{tpu_custom_call.1} parent=1 // pred_fallthru
      _
    // Predicated region
    $region6: #{tpu_custom_call.1} parent=1 // pred_check
      _
    $region7: #{tpu_custom_call.1} parent=1 // pred_check_branch
      %25 = sbr.rel (0) target = $region9
    $region8: #{tpu_custom_call.1} parent=1 // pred_region
      %s27 = ssub.s32 256, 256
      %28 = vsyncadd [#allocation6], %s27
      %s29 = sshll.u32 [#allocation5], 4
      %s30 = int_to_ptr.vmem [resolvable:$true] %s29
      %35 = dma.hbm_to_vmem [thread:$0]  %s1, 256, %s30, [#allocation6], 64, 64, 4
    $region9: #{tpu_custom_call.1} parent=1 // pred_fallthru
      _
    // Predicated region
    $region10: #{tpu_custom_call.1} parent=1 // pred_check
      _
    $region11: #{tpu_custom_call.1} parent=1 // pred_check_branch
      %37 = sbr.rel (0) target = $region13
    $region12: #{tpu_custom_call.1} parent=1 // pred_region
      _
    $region13: #{tpu_custom_call.1} parent=1 // pred_fallthru
      _
    // Predicated region
    $region14: #{tpu_custom_call.1} parent=1 // pred_check
      _
    $region15: #{tpu_custom_call.1} parent=1 // pred_check_branch
      %39 = sbr.rel (0) target = $region17
    $region16: #{tpu_custom_call.1} parent=1 // pred_region
      _
    $region17: #{tpu_custom_call.1} parent=1 // pred_fallthru
      _
    // Predicated region
    $region18: #{tpu_custom_call.1} parent=1 // pred_check
      _
    $region19: #{tpu_custom_call.1} parent=1 // pred_check_branch
      %41 = sbr.rel (0) target = $region21
    $region20: #{tpu_custom_call.1} parent=1 // pred_region
      %42 = dma.done [#allocation3], 128
    $region21: #{tpu_custom_call.1} parent=1 // pred_fallthru
      _
    // Predicated region
    $region22: #{tpu_custom_call.1} parent=1 // pred_check
      _
    $region23: #{tpu_custom_call.1} parent=1 // pred_check_branch
      %44 = sbr.rel (0) target = $region25
    $region24: #{tpu_custom_call.1} parent=1 // pred_region
      %45 = dma.done [#allocation6], 256
    $region25: #{tpu_custom_call.1} parent=1 // pred_fallthru
      _
    %v47 = vld [vmem:[#allocation2] sm:$0xf]
    %v48 = vld [vmem:[#allocation2 + $0x4] sm:$0xf]
    %v49 = vld [vmem:[#allocation5] sm:$0xf]
    %v50 = vld [vmem:[#allocation5 + $0x4] sm:$0xf]
    %v51 = vld [vmem:[#allocation5 + $0x8] sm:$0xf]
    %v52 = vld [vmem:[#allocation5 + $0xc] sm:$0xf]
    %v55 = vunpack.c.l.b16 %v47
    %v56 = vunpack.c.l.b16 %v48
    %v57 = vpack.c.b16 %v56, %v55
    %v62 = vunpack.c.l.b16 %v49
    %v63 = vunpack.c.l.b16 %v50
    %v64 = vunpack.c.l.b16 %v51
    %v65 = vunpack.c.l.b16 %v52
    %v66 = vpack.c.b16 %v63, %v62
    %v67 = vpack.c.b16 %v65, %v64
    %vm70 = vcmask 261120
    %v72 = vsel %vm70, %v57, 0
    %74 = vmatprep.subr.bf16.mxu0 0
    %75 = vmatpush1.bf16.msra.mxu0 %v66
    %76 = vmatprep.subr.bf16.mxu0 0
    %77 = vmatpush1.bf16.msra.mxu0 %v67
    %78 = vmatprep.subr.bf16.mxu0 0
    %79 = vmatpush1.bf16.msra.mxu0 0
    %80 = vmatprep.subr.bf16.mxu0 0
    %81 = vmatpush1.bf16.msra.mxu0 0
    %82 = vmatprep.subr.bf16.mxu0 0
    %83 = vmatpush1.bf16.msra.mxu0 0
    %84 = vmatprep.subr.bf16.mxu0 0
    %85 = vmatpush1.bf16.msra.mxu0 0
    %86 = vmatprep.subr.bf16.mxu0 0
    %87 = vmatpush1.bf16.msra.mxu0 0
    %88 = vmatprep.subr.bf16.mxu0 0
    %89 = vmatpush1.bf16.msra.mxu0 0
    %90 = vmatprep.subr.bf16.mxu0 0
    %91 = vmatpush1.bf16.msra.mxu0 0
    %92 = vmatprep.subr.bf16.mxu0 0
    %93 = vmatpush1.bf16.msra.mxu0 0
    %94 = vmatprep.subr.bf16.mxu0 0
    %95 = vmatpush1.bf16.msra.mxu0 0
    %96 = vmatprep.subr.bf16.mxu0 0
    %97 = vmatpush1.bf16.msra.mxu0 0
    %98 = vmatprep.subr.bf16.mxu0 0
    %99 = vmatpush1.bf16.msra.mxu0 0
    %100 = vmatprep.subr.bf16.mxu0 0
    %101 = vmatpush1.bf16.msra.mxu0 0
    %102 = vmatprep.subr.bf16.mxu0 0
    %103 = vmatpush1.bf16.msra.mxu0 0
    %104 = vmatprep.subr.bf16.mxu0 0
    %105 = vmatpush1.bf16.msra.mxu0 0
    %106 = vmatprep.mubr.bf16.mxu0 0
    %107 = vmatmul.mubr.bf16.gmra.mrb[0].mxu0 %v72
    %v108 = vpop.f32.mrb[0].mxu0
    %v109 = vadd.f32 0.0, %v108
    %v110 = vpop.f32.mrb[0].mxu0
    %v111 = vpop.f32.mrb[0].mxu0
    %v112 = vadd.f32 0.0, %v111
    %v113 = vpop.f32.mrb[0].mxu0
    %114 = vdwg.mxu0
    %v115 = vadd.f32 %v109, %v112
    %v116 = vrot.slane %v115, 4
    %v117 = vadd.f32 %v115, %v116
    %v118 = vrot.slane %v117, 2
    %v119 = vadd.f32 %v117, %v118
    %v120 = vrot.slane %v119, 1
    %v121 = vadd.f32 %v119, %v120
    %v122 = vmul.f32 %v121, 0.0625
    %v123 = vmul.f32 %v109, %v109
    %v124 = vmul.f32 %v112, %v112
    %v125 = vadd.f32 %v123, %v124
    %v126 = vrot.slane %v125, 4
    %v127 = vadd.f32 %v125, %v126
    %v128 = vrot.slane %v127, 2
    %v129 = vadd.f32 %v127, %v128
    %v130 = vrot.slane %v129, 1
    %v131 = vadd.f32 %v129, %v130
    %v132 = vmul.f32 %v131, 0.0625
    %v133 = vmul.f32 %v122, %v122
    %v134 = vsub.f32 %v132, %v133
    %v135 = vadd.f32 %v134, 1e-05
    %v136 = vrsqrt.pop %v135
    %v137 = vld [vmem:[%s2] sm:$0x1]
    %v138 = vmul.f32 %v137, %v136
    %v139 = vld [vmem:[%s3] sm:$0x1]
    %v140 = vmul.f32 %v122, %v138
    %v141 = vsub.f32 %v139, %v140
    %v143 = vlaneseq
    %v144 = vshrl.u32 %v143, 7
    %v145 = vsub.s32 0, %v144
    %v146 = vrot.slane %v138, %v145
    %v148 = vmul.f32 %v109, %v146
    %v149 = vmul.f32 %v112, %v146
    %v151 = vlaneseq
    %v152 = vshrl.u32 %v151, 7
    %v153 = vsub.s32 0, %v152
    %v154 = vrot.slane %v141, %v153
    %v156 = vadd.f32 %v148, %v154
    %v157 = vadd.f32 %v149, %v154
    %v158 = vmul.f32 %v156, 0.01
    %v159 = vmul.f32 %v157, 0.01
    %v160 = vmax.f32 %v156, %v158
    %v161 = vmax.f32 %v157, %v159
    %162 = vst [vmem:[#allocation7] sm:$0xff] %v160
    %163 = vst [vmem:[#allocation7 + $0x8] sm:$0xff] %v161
    // Predicated region
    $region26: #{tpu_custom_call.1} parent=1 // pred_check
      _
    $region27: #{tpu_custom_call.1} parent=1 // pred_check_branch
      %165 = sbr.rel (0) target = $region29
    $region28: #{tpu_custom_call.1} parent=1 // pred_region
      %s167 = ssub.s32 256, 256
      %168 = vsyncadd [#allocation4], %s167
      %s169 = sshll.u32 [#allocation7], 4
      %s170 = int_to_ptr.vmem [resolvable:$true] %s169
      %175 = dma.vmem_to_hbm [thread:$0]  %s170, 256, %s4, [#allocation4], 128, 128, 8
    $region29: #{tpu_custom_call.1} parent=1 // pred_fallthru
      _
    // Predicated region
    $region30: #{tpu_custom_call.1} parent=1 // pred_check
      _
    $region31: #{tpu_custom_call.1} parent=1 // pred_check_branch
      %177 = sbr.rel (0) target = $region33
    $region32: #{tpu_custom_call.1} parent=1 // pred_region
      %178 = dma.done [#allocation4], 256
    $region33: #{tpu_custom_call.1} parent=1 // pred_fallthru
      _
    %179 = vsyncpa [#allocation3], 1
    %180 = vsyncpa [#allocation6], 1
    %181 = vsyncpa [#allocation4], 1

</llo_original>
